<compile_context>
chip_gen: v5e
topology: v5e:2x2
jax: 0.10.0
libtpu: 0.0.40
codegen_flags: <defaults>
</compile_context>

<pallas_src>
import jax
import jax.numpy as jnp
from jax.experimental import pallas as pl
from jax.experimental.pallas import tpu as pltpu


def _round_up(n, m):
    return ((n + m - 1) // m) * m


def embed_nn_kernel(x_ref, w1_ref, b1_ref, w2_ref, b2_ref, out_ref, emb_ref):
    # embedding = x @ W1 + b1   (fp32 MXU accumulation; bias add in fp32)
    x = x_ref[...]
    emb = jnp.dot(x, w1_ref[...], preferred_element_type=jnp.float32)
    emb = emb + b1_ref[...]                      # b1 is [1, hidden_p], broadcasts
    emb_ref[...] = emb.astype(emb_ref.dtype)

    # out = relu(embedding) @ W2 + b2  (ReLU in fp32; cast only at the MXU input)
    h = jnp.maximum(emb, 0.0).astype(w2_ref.dtype)
    out = jnp.dot(h, w2_ref[...], preferred_element_type=jnp.float32)
    out = out + b2_ref[...]                      # b2 is [1, out_p], broadcasts
    out_ref[...] = out.astype(out_ref.dtype)


def embed_nn_forward(x, w1, b1, w2, b2, *, block_batch=512,
                     matmul_dtype=None, lane_pad=True):
    """x: [B, in], w1: [in, hidden], b1: [hidden], w2: [hidden, out], b2: [out].

    matmul_dtype: optional dtype (e.g. jnp.bfloat16) for the MXU operands;
                  accumulation, bias add and ReLU stay fp32.
    lane_pad:     pad hidden/out feature dims to multiples of 128 so output
                  stores are lane-dense (sliced off before returning).
    """
    B, in_size = x.shape
    hidden = w1.shape[1]
    out_size = w2.shape[1]
    out_dtype = x.dtype

    mm_dtype = matmul_dtype if matmul_dtype is not None else x.dtype
    x_mm = x.astype(mm_dtype)
    w1_mm = w1.astype(mm_dtype)
    w2_mm = w2.astype(mm_dtype)
    b1_f32 = b1.astype(jnp.float32)
    b2_f32 = b2.astype(jnp.float32)

    # ---- Lane-pad feature dims so emb/out writebacks are unmasked stores ----
    hidden_p = _round_up(hidden, 128) if lane_pad else hidden
    out_p = _round_up(out_size, 128) if lane_pad else out_size
    if hidden_p != hidden:
        w1_mm = jnp.pad(w1_mm, ((0, 0), (0, hidden_p - hidden)))
        b1_f32 = jnp.pad(b1_f32, (0, hidden_p - hidden))
        w2_mm = jnp.pad(w2_mm, ((0, hidden_p - hidden), (0, 0)))
    if out_p != out_size:
        w2_mm = jnp.pad(w2_mm, ((0, 0), (0, out_p - out_size)))
        b2_f32 = jnp.pad(b2_f32, (0, out_p - out_size))
    b1_2d = b1_f32.reshape(1, hidden_p)
    b2_2d = b2_f32.reshape(1, out_p)

    # ---- Batch tile size + VMEM budget (sized for v7x's 64 MiB VMEM) --------
    mm_itemsize = jnp.dtype(mm_dtype).itemsize
    out_itemsize = jnp.dtype(out_dtype).itemsize

    bm = max(8, min(_round_up(int(block_batch), 8), _round_up(B, 8)))

    def vmem_estimate(bm_):
        # resident weights + biases
        w_bytes = (in_size * hidden_p + hidden_p * out_p) * mm_itemsize \
                  + (hidden_p + out_p) * 4
        # double-buffered streamed tiles (x in; out/emb writeback)
        tile_bytes = 2 * bm_ * (in_size * mm_itemsize
                                + (hidden_p + out_p) * out_itemsize)
        # in-kernel fp32 intermediates
        temp_bytes = bm_ * (hidden_p + out_p) * 4
        return w_bytes + tile_bytes + temp_bytes

    while bm > 8 and vmem_estimate(bm) > 48 * 1024 * 1024:
        bm = max(8, _round_up(bm // 2, 8))
    vmem_limit = int(min(64 * 1024 * 1024,
                         max(32 * 1024 * 1024, 2 * vmem_estimate(bm))))

    # ---- Pad batch to a multiple of the tile (sliced off on return) ---------
    B_pad = _round_up(B, bm)
    if B_pad != B:
        x_mm = jnp.pad(x_mm, ((0, B_pad - B), (0, 0)))
    grid = (B_pad // bm,)

    flops = 2 * B_pad * (in_size * hidden_p + hidden_p * out_p)
    bytes_accessed = int(
        B_pad * in_size * mm_itemsize
        + (in_size * hidden_p + hidden_p * out_p) * mm_itemsize
        + (hidden_p + out_p) * 4
        + B_pad * (hidden_p + out_p) * out_itemsize)
    cost = pl.CostEstimate(flops=flops, transcendentals=0,
                           bytes_accessed=bytes_accessed)

    out_pad, emb_pad = pl.pallas_call(
        embed_nn_kernel,
        out_shape=(
            jax.ShapeDtypeStruct((B_pad, out_p), out_dtype),     # out
            jax.ShapeDtypeStruct((B_pad, hidden_p), out_dtype),  # embedding
        ),
        grid=grid,
        in_specs=[
            pl.BlockSpec((bm, in_size), lambda i: (i, 0)),       # x: streamed
            pl.BlockSpec((in_size, hidden_p), lambda i: (0, 0)), # W1: resident
            pl.BlockSpec((1, hidden_p), lambda i: (0, 0)),       # b1: resident
            pl.BlockSpec((hidden_p, out_p), lambda i: (0, 0)),   # W2: resident
            pl.BlockSpec((1, out_p), lambda i: (0, 0)),          # b2: resident
        ],
        out_specs=(
            pl.BlockSpec((bm, out_p), lambda i: (i, 0)),
            pl.BlockSpec((bm, hidden_p), lambda i: (i, 0)),
        ),
        compiler_params=pltpu.CompilerParams(
            dimension_semantics=("parallel",),
            vmem_limit_bytes=vmem_limit,
        ),
        cost_estimate=cost,
    )(x_mm, w1_mm, b1_2d, w2_mm, b2_2d)

    return out_pad[:B, :out_size], emb_pad[:B, :hidden]


def init_params(key, input_size, hidden_size, output_size, dtype=jnp.float32):
    """Deterministic init mimicking PyTorch nn.Linear: U(-1/sqrt(fan_in), +1/sqrt(fan_in))."""
    k1, k2, k3, k4 = jax.random.split(key, 4)
    bound1 = 1.0 / jnp.sqrt(input_size)
    bound2 = 1.0 / jnp.sqrt(hidden_size)
    # Stored pre-transposed as [in, out] relative to PyTorch's [out, in].
    w1 = jax.random.uniform(k1, (input_size, hidden_size), dtype, -bound1, bound1)
    b1 = jax.random.uniform(k2, (hidden_size,), dtype, -bound1, bound1)
    w2 = jax.random.uniform(k3, (hidden_size, output_size), dtype, -bound2, bound2)
    b2 = jax.random.uniform(k4, (output_size,), dtype, -bound2, bound2)
    return w1, b1, w2, b2


if __name__ == "__main__":
    input_size, hidden_size, output_size = 32, 64, 16
    batch = 8

    key = jax.random.PRNGKey(0)
    kx, kp = jax.random.split(key)
    x = jax.random.normal(kx, (batch, input_size), jnp.float32)
    w1, b1, w2, b2 = init_params(kp, input_size, hidden_size, output_size)

    # Reference in plain JAX.
    emb_ref = x @ w1 + b1
    out_ref = jnp.maximum(emb_ref, 0.0) @ w2 + b2

    # fp32 path (tight correctness check).
    out, embedding = embed_nn_forward(x, w1, b1, w2, b2)
    jax.block_until_ready((out, embedding))
    assert out.shape == (batch, output_size)
    assert embedding.shape == (batch, hidden_size)
    assert jnp.allclose(embedding, emb_ref, atol=1e-5, rtol=1e-5)
    assert jnp.allclose(out, out_ref, atol=1e-5, rtol=1e-5)

    # Multi-tile batch grid with a ragged batch (exercises padding + slicing).
    batch2 = 40
    x2 = jax.random.normal(jax.random.PRNGKey(1), (batch2, input_size), jnp.float32)
    out2, emb2 = embed_nn_forward(x2, w1, b1, w2, b2, block_batch=16)
    jax.block_until_ready((out2, emb2))
    emb2_ref = x2 @ w1 + b1
    out2_ref = jnp.maximum(emb2_ref, 0.0) @ w2 + b2
    assert out2.shape == (batch2, output_size)
    assert emb2.shape == (batch2, hidden_size)
    assert jnp.allclose(emb2, emb2_ref, atol=1e-5, rtol=1e-5)
    assert jnp.allclose(out2, out2_ref, atol=1e-5, rtol=1e-5)

    # bf16 MXU-operand path (v6e/v7x); fp32 accumulation keeps error small.
    out3, emb3 = embed_nn_forward(x, w1, b1, w2, b2, matmul_dtype=jnp.bfloat16)
    jax.block_until_ready((out3, emb3))
    assert jnp.allclose(emb3, emb_ref, atol=5e-2, rtol=5e-2)
    assert jnp.allclose(out3, out_ref, atol=5e-2, rtol=5e-2)

    print("KERNEL_OK")
</pallas_src>

<mosaic_0001>
module attributes {stable_mosaic.version = 11 : i64} {
  func.func @embed_nn_kernel(%arg0: i32, %arg1: memref<8x32xf32, #tpu.memory_space<vmem>>, %arg2: memref<32x128xf32, #tpu.memory_space<vmem>>, %arg3: memref<1x128xf32, #tpu.memory_space<vmem>>, %arg4: memref<128x128xf32, #tpu.memory_space<vmem>>, %arg5: memref<1x128xf32, #tpu.memory_space<vmem>>, %arg6: memref<8x128xf32, #tpu.memory_space<vmem>>, %arg7: memref<8x128xf32, #tpu.memory_space<vmem>>) attributes {dimension_semantics = [#tpu.dimension_semantics<parallel>], iteration_bounds = array<i64: 1>, scalar_prefetch = 0 : i64, scratch_operands = 0 : i64, tpu.core_type = #tpu.core_type<tc>, window_params = [{transform_indices = @transform_0, window_bounds = array<i64: 8, 32>}, {pipeline_mode = #tpu.pipeline_mode<synchronous>, transform_indices = @transform_1, window_bounds = array<i64: 32, 128>}, {pipeline_mode = #tpu.pipeline_mode<synchronous>, transform_indices = @transform_2, window_bounds = array<i64: 1, 128>}, {pipeline_mode = #tpu.pipeline_mode<synchronous>, transform_indices = @transform_3, window_bounds = array<i64: 128, 128>}, {pipeline_mode = #tpu.pipeline_mode<synchronous>, transform_indices = @transform_4, window_bounds = array<i64: 1, 128>}, {transform_indices = @transform_5, window_bounds = array<i64: 8, 128>}, {transform_indices = @transform_6, window_bounds = array<i64: 8, 128>}]} {
    %c0 = arith.constant 0 : index
    %c0_0 = arith.constant 0 : index
    %0 = vector.load %arg1[%c0, %c0_0] : memref<8x32xf32, #tpu.memory_space<vmem>>, vector<8x32xf32>
    %c0_1 = arith.constant 0 : index
    %c0_2 = arith.constant 0 : index
    %1 = vector.load %arg2[%c0_1, %c0_2] : memref<32x128xf32, #tpu.memory_space<vmem>>, vector<32x128xf32>
    %cst = arith.constant dense<0.000000e+00> : vector<8x128xf32>
    %2 = tpu.matmul %0, %1, %cst {dimension_numbers = #tpu.dot_dimension_numbers<[1], [0], [0], [1], [0, 0, 1, 1], [], []>} : vector<8x32xf32>, vector<32x128xf32>, vector<8x128xf32> -> vector<8x128xf32>
    %c0_3 = arith.constant 0 : index
    %c0_4 = arith.constant 0 : index
    %3 = vector.load %arg3[%c0_3, %c0_4] : memref<1x128xf32, #tpu.memory_space<vmem>>, vector<1x128xf32>
    %4 = vector.broadcast %3 : vector<1x128xf32> to vector<8x128xf32>
    %5 = arith.addf %2, %4 : vector<8x128xf32>
    %c0_5 = arith.constant 0 : index
    %c0_6 = arith.constant 0 : index
    %6 = vector.load %arg7[%c0_5, %c0_6] : memref<8x128xf32, #tpu.memory_space<vmem>>, vector<8x128xf32>
    tpu.vector_store %arg7[%c0_5, %c0_6], %5 {strides = array<i32>} : memref<8x128xf32, #tpu.memory_space<vmem>>, vector<8x128xf32>,
    %cst_7 = arith.constant 0.000000e+00 : f32
    %7 = vector.broadcast %cst_7 : f32 to vector<8x128xf32>
    %8 = arith.maximumf %5, %7 : vector<8x128xf32>
    %c0_8 = arith.constant 0 : index
    %c0_9 = arith.constant 0 : index
    %9 = vector.load %arg4[%c0_8, %c0_9] : memref<128x128xf32, #tpu.memory_space<vmem>>, vector<128x128xf32>
    %cst_10 = arith.constant dense<0.000000e+00> : vector<8x128xf32>
    %10 = tpu.matmul %8, %9, %cst_10 {dimension_numbers = #tpu.dot_dimension_numbers<[1], [0], [0], [1], [0, 0, 1, 1], [], []>} : vector<8x128xf32>, vector<128x128xf32>, vector<8x128xf32> -> vector<8x128xf32>
    %c0_11 = arith.constant 0 : index
    %c0_12 = arith.constant 0 : index
    %11 = vector.load %arg5[%c0_11, %c0_12] : memref<1x128xf32, #tpu.memory_space<vmem>>, vector<1x128xf32>
    %12 = vector.broadcast %11 : vector<1x128xf32> to vector<8x128xf32>
    %13 = arith.addf %10, %12 : vector<8x128xf32>
    %c0_13 = arith.constant 0 : index
    %c0_14 = arith.constant 0 : index
    %14 = vector.load %arg6[%c0_13, %c0_14] : memref<8x128xf32, #tpu.memory_space<vmem>>, vector<8x128xf32>
    tpu.vector_store %arg6[%c0_13, %c0_14], %13 {strides = array<i32>} : memref<8x128xf32, #tpu.memory_space<vmem>>, vector<8x128xf32>,
    return
  }
  func.func @transform_0(%arg0: i32) -> (i32, i32) {
    %c0_i32 = arith.constant 0 : i32
    %c0_i32_0 = arith.constant 0 : i32
    return %arg0, %c0_i32 : i32, i32
  }
  func.func @transform_1(%arg0: i32) -> (i32, i32) {
    %c0_i32 = arith.constant 0 : i32
    %c0_i32_0 = arith.constant 0 : i32
    %c0_i32_1 = arith.constant 0 : i32
    return %c0_i32, %c0_i32_0 : i32, i32
  }
  func.func @transform_2(%arg0: i32) -> (i32, i32) {
    %c0_i32 = arith.constant 0 : i32
    %c0_i32_0 = arith.constant 0 : i32
    %c0_i32_1 = arith.constant 0 : i32
    return %c0_i32, %c0_i32_0 : i32, i32
  }
  func.func @transform_3(%arg0: i32) -> (i32, i32) {
    %c0_i32 = arith.constant 0 : i32
    %c0_i32_0 = arith.constant 0 : i32
    %c0_i32_1 = arith.constant 0 : i32
    return %c0_i32, %c0_i32_0 : i32, i32
  }
  func.func @transform_4(%arg0: i32) -> (i32, i32) {
    %c0_i32 = arith.constant 0 : i32
    %c0_i32_0 = arith.constant 0 : i32
    %c0_i32_1 = arith.constant 0 : i32
    return %c0_i32, %c0_i32_0 : i32, i32
  }
  func.func @transform_5(%arg0: i32) -> (i32, i32) {
    %c0_i32 = arith.constant 0 : i32
    %c0_i32_0 = arith.constant 0 : i32
    return %arg0, %c0_i32 : i32, i32
  }
  func.func @transform_6(%arg0: i32) -> (i32, i32) {
    %c0_i32 = arith.constant 0 : i32
    %c0_i32_0 = arith.constant 0 : i32
    return %arg0, %c0_i32 : i32, i32
  }
}

</mosaic_0001>

<llo_original>
// kernel: tpu_custom_call.1
$region0: #{tpu_custom_call.1}
  #allocation0 [shape = 'u32[]', space=smem, size = 0x4, offset = 0x4, fixed_abs, tag = 'smem constant byte address 0x4 - core index']
  #allocation1 [shape = 'u32[72,128]{1,0:T(1,128)}', space=vmem, size = 0x9000, scoped, tag = 'internal scratch']
  %s0 = inlined_call_operand.hbm [shape: f32[8,32], index: 0, kind: input, shape index: {}]
  %s1 = inlined_call_operand.hbm [shape: f32[32,128], index: 1, kind: input, shape index: {}]
  %s2 = inlined_call_operand.vmem [shape: f32[1,128], index: 2, kind: input, shape index: {}]
  %s3 = inlined_call_operand.hbm [shape: f32[128,128], index: 3, kind: input, shape index: {}]
  %s4 = inlined_call_operand.vmem [shape: f32[1,128], index: 4, kind: input, shape index: {}]
  %s5 = inlined_call_operand.hbm [shape: f32[8,128], index: 5, kind: output, shape index: {0}]
  %s6 = inlined_call_operand.hbm [shape: f32[8,128], index: 6, kind: output, shape index: {1}]
  %7 = xla_tuple %s5, %s6
  %s8 = sld [smem:[#allocation0]]
  $region50: #{tpu_custom_call.1} parent=0
    _
  %s10 = ssub.s32 1, %s8
  %s11 = scalar_select 0, %s10, %s8
  $region1: #{tpu_custom_call.1} parent=0
    #allocation2 [shape = 'u8[4096]{0}', space=vmem, size = 0x1000, scoped, tag = 'input window, operand 0, single buffered']
    #allocation3 [shape = 's32[1]{0}', space=sflag, size = 0x4, scoped, tag = 'scoped memory for tpu_custom_call.1']
    #allocation4 [shape = 's32[1]{0}', space=sflag, size = 0x4, scoped, tag = 'scoped memory for tpu_custom_call.1']
    #allocation5 [shape = 'u8[16384]{0}', space=vmem, size = 0x4000, scoped, tag = 'input window, operand 1, single buffered']
    #allocation6 [shape = 's32[1]{0}', space=sflag, size = 0x4, scoped, tag = 'scoped memory for tpu_custom_call.1']
    #allocation7 [shape = 'u8[65536]{0}', space=vmem, size = 0x10000, scoped, tag = 'input window, operand 3, single buffered']
    #allocation8 [shape = 'u8[4096]{0}', space=vmem, size = 0x1000, scoped, tag = 'output window, operand 0, single buffered']
    #allocation9 [shape = 'u8[4096]{0}', space=vmem, size = 0x1000, scoped, tag = 'output window, operand 1, single buffered']
    #allocation10 [shape = 's32[1]{0}', space=sflag, size = 0x4, scoped, tag = 'scoped memory for tpu_custom_call.1']
    %12 = vsyncpa [#allocation3], 0
    %13 = vsyncpa [#allocation6], 0
    %14 = vsyncpa [#allocation4], 0
    %15 = vsyncpa [#allocation10], 0
    // Predicated region
    $region2: #{tpu_custom_call.1} parent=1 // pred_check
      _
    $region3: #{tpu_custom_call.1} parent=1 // pred_check_branch
      %17 = sbr.rel (0) target = $region5
    $region4: #{tpu_custom_call.1} parent=1 // pred_region
      %19 = vsyncadd [#allocation3], 0
      %s21 = sshll.u32 %s0, 4
      %s22 = int_to_ptr.hbm [resolvable:$true] %s21
      %s23 = sshll.u32 [#allocation2], 4
      %s24 = int_to_ptr.vmem [resolvable:$true] %s23
      %26 = dma.hbm_to_vmem [thread:$0]  %s22, 128, %s24, [#allocation3]
    $region5: #{tpu_custom_call.1} parent=1 // pred_fallthru
      _
    // Predicated region
    $region6: #{tpu_custom_call.1} parent=1 // pred_check
      _
    $region7: #{tpu_custom_call.1} parent=1 // pred_check_branch
      %28 = sbr.rel (0) target = $region9
    $region8: #{tpu_custom_call.1} parent=1 // pred_region
      %30 = vsyncadd [#allocation6], 0
      %s31 = sshll.u32 %s1, 4
      %s32 = int_to_ptr.hbm [resolvable:$true] %s31
      %s33 = sshll.u32 [#allocation5], 4
      %s34 = int_to_ptr.vmem [resolvable:$true] %s33
      %39 = dma.hbm_to_vmem [thread:$0]  %s32, 512, %s34, [#allocation6], 128, 128, 8
    $region9: #{tpu_custom_call.1} parent=1 // pred_fallthru
      _
    // Predicated region
    $region10: #{tpu_custom_call.1} parent=1 // pred_check
      _
    $region11: #{tpu_custom_call.1} parent=1 // pred_check_branch
      %41 = sbr.rel (0) target = $region13
    $region12: #{tpu_custom_call.1} parent=1 // pred_region
      _
    $region13: #{tpu_custom_call.1} parent=1 // pred_fallthru
      _
    // Predicated region
    $region14: #{tpu_custom_call.1} parent=1 // pred_check
      _
    $region15: #{tpu_custom_call.1} parent=1 // pred_check_branch
      %43 = sbr.rel (0) target = $region17
    $region16: #{tpu_custom_call.1} parent=1 // pred_region
      %45 = vsyncadd [#allocation6], 0
      %s46 = sshll.u32 %s3, 4
      %s47 = int_to_ptr.hbm [resolvable:$true] %s46
      %s48 = sshll.u32 [#allocation7], 4
      %s49 = int_to_ptr.vmem [resolvable:$true] %s48
      %54 = dma.hbm_to_vmem [thread:$0]  %s47, 2048, %s49, [#allocation6], 128, 128, 8
    $region17: #{tpu_custom_call.1} parent=1 // pred_fallthru
      _
    // Predicated region
    $region18: #{tpu_custom_call.1} parent=1 // pred_check
      _
    $region19: #{tpu_custom_call.1} parent=1 // pred_check_branch
      %56 = sbr.rel (0) target = $region21
    $region20: #{tpu_custom_call.1} parent=1 // pred_region
      _
    $region21: #{tpu_custom_call.1} parent=1 // pred_fallthru
      _
    // Predicated region
    $region22: #{tpu_custom_call.1} parent=1 // pred_check
      _
    $region23: #{tpu_custom_call.1} parent=1 // pred_check_branch
      %58 = sbr.rel (0) target = $region25
    $region24: #{tpu_custom_call.1} parent=1 // pred_region
      %60 = dma.done [#allocation3], 128
    $region25: #{tpu_custom_call.1} parent=1 // pred_fallthru
      _
    // Predicated region
    $region26: #{tpu_custom_call.1} parent=1 // pred_check
      _
    $region27: #{tpu_custom_call.1} parent=1 // pred_check_branch
      %62 = sbr.rel (0) target = $region29
    $region28: #{tpu_custom_call.1} parent=1 // pred_region
      %64 = dma.done [#allocation6], 512
    $region29: #{tpu_custom_call.1} parent=1 // pred_fallthru
      _
    // Predicated region
    $region30: #{tpu_custom_call.1} parent=1 // pred_check
      _
    $region31: #{tpu_custom_call.1} parent=1 // pred_check_branch
      %66 = sbr.rel (0) target = $region33
    $region32: #{tpu_custom_call.1} parent=1 // pred_region
      %68 = dma.done [#allocation6], 2048
    $region33: #{tpu_custom_call.1} parent=1 // pred_fallthru
      _
    %v69 = vld [vmem:[#allocation2] sm:$0xff]
    %v70 = vld [vmem:[#allocation5] sm:$0xff]
    %v71 = vld [vmem:[#allocation5 + $0x8] sm:$0xff]
    %v72 = vld [vmem:[#allocation5 + $0x10] sm:$0xff]
    %v73 = vld [vmem:[#allocation5 + $0x18] sm:$0xff]
    %v74 = vld [vmem:[%s2] sm:$0x1]
    %v76 = vperm.slane %v74, 0
    %vm78 = vcmask 261120
    %v80 = vsel %vm78, %v69, 0
    %82 = vmatpush.msra.mxu0 0.0
    %83 = vmatpush.msra.mxu0 0.0
    %84 = vmatpush.msra.mxu0 0.0
    %85 = vmatpush.msra.mxu0 0.0
    %86 = vmatpush.msra.mxu0 0.0
    %87 = vmatpush.msra.mxu0 0.0
    %88 = vmatpush.msra.mxu0 0.0
    %89 = vmatpush.msra.mxu0 0.0
    %90 = vmatpush.msra.mxu0 0.0
    %91 = vmatpush.msra.mxu0 0.0
    %92 = vmatpush.msra.mxu0 0.0
    %93 = vmatpush.msra.mxu0 0.0
    %94 = vmatpush.msra.mxu0 %v73
    %95 = vmatpush.msra.mxu0 %v72
    %96 = vmatpush.msra.mxu0 %v71
    %97 = vmatpush.msra.mxu0 %v70
    %98 = vmatmul.f32.gmra.mxu0 %v80
    %v99 = vpop.f32.mrf.mxu0
    %v100 = vadd.f32 %v76, %v99
    %101 = vdwg.mxu0
    %102 = vst [vmem:[#allocation9] sm:$0xff] %v100
    %v103 = vmax.f32 %v100, 0.0
    %v104 = vld [vmem:[#allocation7] sm:$0xff]
    %v105 = vld [vmem:[#allocation7 + $0x8] sm:$0xff]
    %v106 = vld [vmem:[#allocation7 + $0x10] sm:$0xff]
    %v107 = vld [vmem:[#allocation7 + $0x18] sm:$0xff]
    %v108 = vld [vmem:[#allocation7 + $0x20] sm:$0xff]
    %v109 = vld [vmem:[#allocation7 + $0x28] sm:$0xff]
    %v110 = vld [vmem:[#allocation7 + $0x30] sm:$0xff]
    %v111 = vld [vmem:[#allocation7 + $0x38] sm:$0xff]
    %v112 = vld [vmem:[#allocation7 + $0x40] sm:$0xff]
    %v113 = vld [vmem:[#allocation7 + $0x48] sm:$0xff]
    %v114 = vld [vmem:[#allocation7 + $0x50] sm:$0xff]
    %v115 = vld [vmem:[#allocation7 + $0x58] sm:$0xff]
    %v116 = vld [vmem:[#allocation7 + $0x60] sm:$0xff]
    %v117 = vld [vmem:[#allocation7 + $0x68] sm:$0xff]
    %v118 = vld [vmem:[#allocation7 + $0x70] sm:$0xff]
    %v119 = vld [vmem:[#allocation7 + $0x78] sm:$0xff]
    %v120 = vld [vmem:[%s4] sm:$0x1]
    %v122 = vperm.slane %v120, 0
    %124 = vmatpush.msra.mxu0 %v119
    %125 = vmatpush.msra.mxu0 %v118
    %126 = vmatpush.msra.mxu0 %v117
    %127 = vmatpush.msra.mxu0 %v116
    %128 = vmatpush.msra.mxu0 %v115
    %129 = vmatpush.msra.mxu0 %v114
    %130 = vmatpush.msra.mxu0 %v113
    %131 = vmatpush.msra.mxu0 %v112
    %132 = vmatpush.msra.mxu0 %v111
    %133 = vmatpush.msra.mxu0 %v110
    %134 = vmatpush.msra.mxu0 %v109
    %135 = vmatpush.msra.mxu0 %v108
    %136 = vmatpush.msra.mxu0 %v107
    %137 = vmatpush.msra.mxu0 %v106
    %138 = vmatpush.msra.mxu0 %v105
    %139 = vmatpush.msra.mxu0 %v104
    %140 = vmatmul.f32.gmra.mxu0 %v103
    %v141 = vpop.f32.mrf.mxu0
    %v142 = vadd.f32 %v122, %v141
    %143 = vdwg.mxu0
    %144 = vst [vmem:[#allocation8] sm:$0xff] %v142
    // Predicated region
    $region34: #{tpu_custom_call.1} parent=1 // pred_check
      _
    $region35: #{tpu_custom_call.1} parent=1 // pred_check_branch
      %146 = sbr.rel (0) target = $region37
    $region36: #{tpu_custom_call.1} parent=1 // pred_region
      %148 = vsyncadd [#allocation4], 0
      %s150 = sshll.u32 [#allocation8], 4
      %s151 = int_to_ptr.vmem [resolvable:$true] %s150
      %s152 = sshll.u32 %s5, 4
      %s153 = int_to_ptr.hbm [resolvable:$true] %s152
      %155 = dma.vmem_to_hbm [thread:$0]  %s151, 128, %s153, [#allocation4]
    $region37: #{tpu_custom_call.1} parent=1 // pred_fallthru
      _
    // Predicated region
    $region38: #{tpu_custom_call.1} parent=1 // pred_check
      _
    $region39: #{tpu_custom_call.1} parent=1 // pred_check_branch
      %157 = sbr.rel (0) target = $region41
    $region40: #{tpu_custom_call.1} parent=1 // pred_region
      %159 = vsyncadd [#allocation10], 0
      %s161 = sshll.u32 [#allocation9], 4
      %s162 = int_to_ptr.vmem [resolvable:$true] %s161
      %s163 = sshll.u32 %s6, 4
      %s164 = int_to_ptr.hbm [resolvable:$true] %s163
      %166 = dma.vmem_to_hbm [thread:$0]  %s162, 128, %s164, [#allocation10]
    $region41: #{tpu_custom_call.1} parent=1 // pred_fallthru
      _
    // Predicated region
    $region42: #{tpu_custom_call.1} parent=1 // pred_check
      _
    $region43: #{tpu_custom_call.1} parent=1 // pred_check_branch
      %168 = sbr.rel (0) target = $region45
    $region44: #{tpu_custom_call.1} parent=1 // pred_region
      %170 = dma.done [#allocation4], 128
    $region45: #{tpu_custom_call.1} parent=1 // pred_fallthru
      _
    // Predicated region
    $region46: #{tpu_custom_call.1} parent=1 // pred_check
      _
    $region47: #{tpu_custom_call.1} parent=1 // pred_check_branch
      %172 = sbr.rel (0) target = $region49
    $region48: #{tpu_custom_call.1} parent=1 // pred_region
      %174 = dma.done [#allocation10], 128
    $region49: #{tpu_custom_call.1} parent=1 // pred_fallthru
      _
    %175 = vsyncpa [#allocation3], 1
    %176 = vsyncpa [#allocation6], 1
    %177 = vsyncpa [#allocation4], 1
    %178 = vsyncpa [#allocation10], 1

</llo_original>
